<compile_context>
chip_gen: v6e
topology: v6e:2x2x1
jax: 0.10.0
libtpu: 0.0.40
codegen_flags: <defaults>
</compile_context>

<pallas_src>
import jax
import jax.numpy as jnp
from jax.experimental import pallas as pl
from jax.experimental.pallas import tpu as pltpu


def _round_up(x, m):
    return ((x + m - 1) // m) * m


def node_embed_kernel(x_ref, w_ref, b_ref, o_ref):
    # x_ref: (tn, E), w_ref: (E, th) (pre-transposed once in the wrapper),
    # b_ref: (1, th) f32, o_ref: (tn, th). MXU matmul with f32 accumulation.
    acc = jnp.dot(x_ref[...], w_ref[...], preferred_element_type=jnp.float32)
    o_ref[...] = (acc + b_ref[...]).astype(o_ref.dtype)


def _vmem_budget_bytes():
    # Generation-aware budget: ~70% of per-core VMEM for tile sizing, and a scoped
    # limit of ~85% so the compiler is not capped at the (small) default.
    # v5e/v6e: 128 MiB -> ~90 MiB budget; v7x: 64 MiB per TC -> ~45 MiB budget.
    cap = 64 * 1024 * 1024  # conservative fallback (v7x per-TC physical)
    try:
        info = pltpu.get_tpu_info()
        cap = int(getattr(info, "vmem_capacity_bytes", cap)) or cap
    except Exception:
        pass
    return int(cap * 0.70), int(cap * 0.85)


def node_embed(node_data, weight, bias, *, block_n=1024, compute_dtype=None):
    """Pallas equivalent of NodeEmbed.forward (a single nn.Linear).

    node_data: [N, E]
    weight:    [H, E]  (PyTorch out_features x in_features layout)
    bias:      [H]
    compute_dtype: optional dtype (e.g. jnp.bfloat16) for x/W inside the matmul;
                   accumulation, bias add and the output stay float32.
    returns:   [N, H] in node_data.dtype
    """
    N, E = node_data.shape
    H = weight.shape[0]
    out_dtype = node_data.dtype

    cdt = compute_dtype if compute_dtype is not None else node_data.dtype
    x = node_data.astype(cdt)
    # One-time transpose to [E, H]: kernel uses the canonical contraction, so the
    # resident weight tile is never re-transposed per grid step.
    w_t = weight.T.astype(cdt)
    b2 = bias.reshape(1, H).astype(jnp.float32)

    in_itemsize = jnp.dtype(cdt).itemsize
    out_itemsize = jnp.dtype(out_dtype).itemsize

    # ---- tile selection --------------------------------------------------
    budget, vmem_limit = _vmem_budget_bytes()

    # H tile: keep full (unpadded) H unless H is a large multiple of 128, in which
    # case tile it lane-dense so the resident weight block stays bounded and small-N
    # workloads still get >1 grid step (helps v7x 2-TC sharding).
    MAX_TH = 2048
    th = MAX_TH if (H % 128 == 0 and H > MAX_TH) else H
    grid_h = pl.cdiv(H, th)

    # Row-tile alignment: bf16 packs 2 rows per sublane -> 16-row multiples.
    align = 16 if in_itemsize < 4 else 8

    # Resident weight + bias (single-buffered when their index map is constant).
    wbufs = 1 if grid_h == 1 else 2
    resident = wbufs * (E * th * in_itemsize + th * 4)
    per_row = 2 * (E * in_itemsize + th * out_itemsize)  # dbl-buffered x + out rows
    tn_cap = max(align, (budget - resident) // max(per_row, 1))
    tn = min(block_n, _round_up(N, align), tn_cap)
    tn = max(align, (tn // align) * align)
    grid_n = pl.cdiv(N, tn)

    # Weight is read from HBM once when it is grid-resident, once per N-tile when
    # H is tiled.
    w_passes = 1 if grid_h == 1 else grid_n
    cost = pl.CostEstimate(
        flops=2 * N * E * H,
        transcendentals=0,
        bytes_accessed=(N * E * in_itemsize
                        + w_passes * E * H * in_itemsize
                        + N * H * out_itemsize
                        + H * 4),
    )

    def _run(single_buffer_resident):
        spec_kwargs = (
            dict(pipeline_mode=pl.Buffered(1)) if single_buffer_resident else {}
        )
        x_spec = pl.BlockSpec((tn, E), lambda i, j: (i, 0))
        w_spec = pl.BlockSpec((E, th), lambda i, j: (0, j), **spec_kwargs)
        b_spec = pl.BlockSpec((1, th), lambda i, j: (0, j), **spec_kwargs)
        o_spec = pl.BlockSpec((tn, th), lambda i, j: (i, j))
        return pl.pallas_call(
            node_embed_kernel,
            out_shape=jax.ShapeDtypeStruct((N, H), out_dtype),
            grid_spec=pltpu.PrefetchScalarGridSpec(
                num_scalar_prefetch=0,
                grid=(grid_n, grid_h),
                in_specs=[x_spec, w_spec, b_spec],
                out_specs=o_spec,
            ),
            compiler_params=pltpu.CompilerParams(
                dimension_semantics=("parallel", "parallel"),
                vmem_limit_bytes=vmem_limit,
            ),
            cost_estimate=cost,
        )(x, w_t, b2)

    if grid_h == 1:
        # Constant-index weight/bias: single-buffer them; fall back gracefully if
        # this jax build rejects pipeline_mode / Buffered(1).
        try:
            return _run(True)
        except Exception:
            return _run(False)
    return _run(False)


if __name__ == "__main__":
    # Shapes implied by the module: N nodes, embedding_size E, node_hidden_size H.
    N, E, H = 8, 32, 64

    key = jax.random.PRNGKey(0)
    k_x, k_w, k_b, k_x2 = jax.random.split(key, 4)

    # Deterministic parameter init (mimicking nn.Linear's uniform(-1/sqrt(E), 1/sqrt(E))).
    bound = 1.0 / (E ** 0.5)
    weight = jax.random.uniform(k_w, (H, E), jnp.float32, -bound, bound)
    bias = jax.random.uniform(k_b, (H,), jnp.float32, -bound, bound)

    node_data = jax.random.normal(k_x, (N, E), jnp.float32)

    # fp32 path (exact PyTorch semantics).
    out = jax.block_until_ready(node_embed(node_data, weight, bias))
    ref = node_data @ weight.T + bias
    assert out.shape == (N, H)
    assert jnp.allclose(out, ref, atol=1e-5, rtol=1e-5)

    # Multi-tile path: N not divisible by the row tile (boundary block handled by Pallas,
    # no wrapper-side padding).
    N2 = 20
    node_data2 = jax.random.normal(k_x2, (N2, E), jnp.float32)
    out2 = jax.block_until_ready(node_embed(node_data2, weight, bias, block_n=8))
    ref2 = node_data2 @ weight.T + bias
    assert out2.shape == (N2, H)
    assert jnp.allclose(out2, ref2, atol=1e-5, rtol=1e-5)

    # bf16 compute path (fp32 accumulate + fp32 bias/output): looser tolerance.
    out3 = jax.block_until_ready(
        node_embed(node_data2, weight, bias, compute_dtype=jnp.bfloat16))
    assert out3.shape == (N2, H)
    assert jnp.allclose(out3, ref2, atol=2e-2, rtol=2e-2)

    print("KERNEL_OK")
</pallas_src>

<mosaic_0001>
module attributes {stable_mosaic.version = 11 : i64} {
  func.func @node_embed_kernel(%arg0: i32, %arg1: i32, %arg2: memref<8x32xf32, #tpu.memory_space<vmem>>, %arg3: memref<32x64xf32, #tpu.memory_space<vmem>>, %arg4: memref<1x64xf32, #tpu.memory_space<vmem>>, %arg5: memref<8x64xf32, #tpu.memory_space<vmem>>) attributes {dimension_semantics = [#tpu.dimension_semantics<parallel>, #tpu.dimension_semantics<parallel>], iteration_bounds = array<i64: 1, 1>, scalar_prefetch = 0 : i64, scratch_operands = 0 : i64, tpu.core_type = #tpu.core_type<tc>, window_params = [{transform_indices = @transform_0, window_bounds = array<i64: 8, 32>}, {pipeline_mode = #tpu.pipeline_mode<synchronous>, transform_indices = @transform_1, window_bounds = array<i64: 32, 64>}, {pipeline_mode = #tpu.pipeline_mode<synchronous>, transform_indices = @transform_2, window_bounds = array<i64: 1, 64>}, {transform_indices = @transform_3, window_bounds = array<i64: 8, 64>}]} {
    %c0 = arith.constant 0 : index
    %c0_0 = arith.constant 0 : index
    %0 = vector.load %arg2[%c0, %c0_0] : memref<8x32xf32, #tpu.memory_space<vmem>>, vector<8x32xf32>
    %c0_1 = arith.constant 0 : index
    %c0_2 = arith.constant 0 : index
    %1 = vector.load %arg3[%c0_1, %c0_2] : memref<32x64xf32, #tpu.memory_space<vmem>>, vector<32x64xf32>
    %cst = arith.constant dense<0.000000e+00> : vector<8x64xf32>
    %2 = tpu.matmul %0, %1, %cst {dimension_numbers = #tpu.dot_dimension_numbers<[1], [0], [0], [1], [0, 0, 1, 1], [], []>} : vector<8x32xf32>, vector<32x64xf32>, vector<8x64xf32> -> vector<8x64xf32>
    %c0_3 = arith.constant 0 : index
    %c0_4 = arith.constant 0 : index
    %3 = vector.load %arg4[%c0_3, %c0_4] : memref<1x64xf32, #tpu.memory_space<vmem>>, vector<1x64xf32>
    %4 = vector.broadcast %3 : vector<1x64xf32> to vector<8x64xf32>
    %5 = arith.addf %2, %4 : vector<8x64xf32>
    %c0_5 = arith.constant 0 : index
    %c0_6 = arith.constant 0 : index
    %6 = vector.load %arg5[%c0_5, %c0_6] : memref<8x64xf32, #tpu.memory_space<vmem>>, vector<8x64xf32>
    tpu.vector_store %arg5[%c0_5, %c0_6], %5 {strides = array<i32>} : memref<8x64xf32, #tpu.memory_space<vmem>>, vector<8x64xf32>,
    return
  }
  func.func @transform_0(%arg0: i32, %arg1: i32) -> (i32, i32) {
    %c0_i32 = arith.constant 0 : i32
    %c0_i32_0 = arith.constant 0 : i32
    return %arg0, %c0_i32 : i32, i32
  }
  func.func @transform_1(%arg0: i32, %arg1: i32) -> (i32, i32) {
    %c0_i32 = arith.constant 0 : i32
    %c0_i32_0 = arith.constant 0 : i32
    return %c0_i32, %arg1 : i32, i32
  }
  func.func @transform_2(%arg0: i32, %arg1: i32) -> (i32, i32) {
    %c0_i32 = arith.constant 0 : i32
    %c0_i32_0 = arith.constant 0 : i32
    return %c0_i32, %arg1 : i32, i32
  }
  func.func @transform_3(%arg0: i32, %arg1: i32) -> (i32, i32) {
    %c0_i32 = arith.constant 0 : i32
    return %arg0, %arg1 : i32, i32
  }
}

module attributes {stable_mosaic.version = 11 : i64} {
  func.func @node_embed_kernel(%arg0: i32, %arg1: i32, %arg2: memref<8x32xf32, #tpu.memory_space<vmem>>, %arg3: memref<32x64xf32, #tpu.memory_space<vmem>>, %arg4: memref<1x64xf32, #tpu.memory_space<vmem>>, %arg5: memref<8x64xf32, #tpu.memory_space<vmem>>) attributes {dimension_semantics = [#tpu.dimension_semantics<parallel>, #tpu.dimension_semantics<parallel>], iteration_bounds = array<i64: 1, 1>, scalar_prefetch = 0 : i64, scratch_operands = 0 : i64, tpu.core_type = #tpu.core_type<tc>, window_params = [{transform_indices = @transform_0, window_bounds = array<i64: 8, 32>}, {transform_indices = @transform_1, window_bounds = array<i64: 32, 64>}, {transform_indices = @transform_2, window_bounds = array<i64: 1, 64>}, {transform_indices = @transform_3, window_bounds = array<i64: 8, 64>}]} {
    %c0 = arith.constant 0 : index
    %c0_0 = arith.constant 0 : index
    %0 = vector.load %arg2[%c0, %c0_0] : memref<8x32xf32, #tpu.memory_space<vmem>>, vector<8x32xf32>
    %c0_1 = arith.constant 0 : index
    %c0_2 = arith.constant 0 : index
    %1 = vector.load %arg3[%c0_1, %c0_2] : memref<32x64xf32, #tpu.memory_space<vmem>>, vector<32x64xf32>
    %cst = arith.constant dense<0.000000e+00> : vector<8x64xf32>
    %2 = tpu.matmul %0, %1, %cst {dimension_numbers = #tpu.dot_dimension_numbers<[1], [0], [0], [1], [0, 0, 1, 1], [], []>} : vector<8x32xf32>, vector<32x64xf32>, vector<8x64xf32> -> vector<8x64xf32>
    %c0_3 = arith.constant 0 : index
    %c0_4 = arith.constant 0 : index
    %3 = vector.load %arg4[%c0_3, %c0_4] : memref<1x64xf32, #tpu.memory_space<vmem>>, vector<1x64xf32>
    %4 = vector.broadcast %3 : vector<1x64xf32> to vector<8x64xf32>
    %5 = arith.addf %2, %4 : vector<8x64xf32>
    %c0_5 = arith.constant 0 : index
    %c0_6 = arith.constant 0 : index
    %6 = vector.load %arg5[%c0_5, %c0_6] : memref<8x64xf32, #tpu.memory_space<vmem>>, vector<8x64xf32>
    tpu.vector_store %arg5[%c0_5, %c0_6], %5 {strides = array<i32>} : memref<8x64xf32, #tpu.memory_space<vmem>>, vector<8x64xf32>,
    return
  }
  func.func @transform_0(%arg0: i32, %arg1: i32) -> (i32, i32) {
    %c0_i32 = arith.constant 0 : i32
    %c0_i32_0 = arith.constant 0 : i32
    return %arg0, %c0_i32 : i32, i32
  }
  func.func @transform_1(%arg0: i32, %arg1: i32) -> (i32, i32) {
    %c0_i32 = arith.constant 0 : i32
    %c0_i32_0 = arith.constant 0 : i32
    return %c0_i32, %arg1 : i32, i32
  }
  func.func @transform_2(%arg0: i32, %arg1: i32) -> (i32, i32) {
    %c0_i32 = arith.constant 0 : i32
    %c0_i32_0 = arith.constant 0 : i32
    return %c0_i32, %arg1 : i32, i32
  }
  func.func @transform_3(%arg0: i32, %arg1: i32) -> (i32, i32) {
    %c0_i32 = arith.constant 0 : i32
    return %arg0, %arg1 : i32, i32
  }
}

</mosaic_0001>

<llo_original>
// kernel: tpu_custom_call.1
$region0: #{tpu_custom_call.1}
  #allocation0 [shape = 'u32[]', space=smem, size = 0x4, offset = 0x4, fixed_abs, tag = 'smem constant byte address 0x4 - core index']
  #allocation1 [shape = 'u32[144,128]{1,0:T(1,128)}', space=vmem, size = 0x12000, scoped, tag = 'internal scratch']
  %s0 = inlined_call_operand.hbm [shape: f32[8,32], index: 0, kind: input, shape index: {}]
  %s1 = inlined_call_operand.hbm [shape: f32[32,64], index: 1, kind: input, shape index: {}]
  %s2 = inlined_call_operand.vmem [shape: f32[1,64], index: 2, kind: input, shape index: {}]
  %s3 = inlined_call_operand.hbm [shape: f32[8,64], index: 3, kind: output, shape index: {}]
  %s4 = sld [smem:[#allocation0]]
  $region30: #{tpu_custom_call.1} parent=0
    _
  %s6 = ssub.s32 1, %s4
  %s7 = scalar_select 0, %s6, %s4
  $region1: #{tpu_custom_call.1} parent=0
    #allocation2 [shape = 'u8[4096]{0}', space=vmem, size = 0x1000, scoped, tag = 'input window, operand 0, single buffered']
    #allocation3 [shape = 's32[1]{0}', space=sflag, size = 0x4, scoped, tag = 'scoped memory for tpu_custom_call.1']
    #allocation4 [shape = 's32[1]{0}', space=sflag, size = 0x4, scoped, tag = 'scoped memory for tpu_custom_call.1']
    #allocation5 [shape = 'u8[16384]{0}', space=vmem, size = 0x4000, scoped, tag = 'input window, operand 1, single buffered']
    #allocation6 [shape = 's32[1]{0}', space=sflag, size = 0x4, scoped, tag = 'scoped memory for tpu_custom_call.1']
    #allocation7 [shape = 'u8[4096]{0}', space=vmem, size = 0x1000, scoped, tag = 'output window, operand 0, single buffered']
    %8 = vsyncpa [#allocation3], 0
    %9 = vsyncpa [#allocation6], 0
    %10 = vsyncpa [#allocation4], 0
    // Predicated region
    $region2: #{tpu_custom_call.1} parent=1 // pred_check
      _
    $region3: #{tpu_custom_call.1} parent=1 // pred_check_branch
      %12 = sbr.rel (0) target = $region5
    $region4: #{tpu_custom_call.1} parent=1 // pred_region
      %s14 = ssub.s32 128, 128
      %15 = vsyncadd [#allocation3], %s14
      %s17 = sshll.u32 [#allocation2], 4
      %s18 = int_to_ptr.vmem [resolvable:$true] %s17
      %20 = dma.hbm_to_vmem [thread:$0]  %s0, 128, %s18, [#allocation3]
    $region5: #{tpu_custom_call.1} parent=1 // pred_fallthru
      _
    // Predicated region
    $region6: #{tpu_custom_call.1} parent=1 // pred_check
      _
    $region7: #{tpu_custom_call.1} parent=1 // pred_check_branch
      %22 = sbr.rel (0) target = $region9
    $region8: #{tpu_custom_call.1} parent=1 // pred_region
      %s24 = ssub.s32 512, 512
      %25 = vsyncadd [#allocation6], %s24
      %s26 = sshll.u32 [#allocation5], 4
      %s27 = int_to_ptr.vmem [resolvable:$true] %s26
      %32 = dma.hbm_to_vmem [thread:$0]  %s1, 512, %s27, [#allocation6], 128, 128, 8
    $region9: #{tpu_custom_call.1} parent=1 // pred_fallthru
      _
    // Predicated region
    $region10: #{tpu_custom_call.1} parent=1 // pred_check
      _
    $region11: #{tpu_custom_call.1} parent=1 // pred_check_branch
      %34 = sbr.rel (0) target = $region13
    $region12: #{tpu_custom_call.1} parent=1 // pred_region
      _
    $region13: #{tpu_custom_call.1} parent=1 // pred_fallthru
      _
    // Predicated region
    $region14: #{tpu_custom_call.1} parent=1 // pred_check
      _
    $region15: #{tpu_custom_call.1} parent=1 // pred_check_branch
      %36 = sbr.rel (0) target = $region17
    $region16: #{tpu_custom_call.1} parent=1 // pred_region
      %37 = dma.done [#allocation3], 128
    $region17: #{tpu_custom_call.1} parent=1 // pred_fallthru
      _
    // Predicated region
    $region18: #{tpu_custom_call.1} parent=1 // pred_check
      _
    $region19: #{tpu_custom_call.1} parent=1 // pred_check_branch
      %39 = sbr.rel (0) target = $region21
    $region20: #{tpu_custom_call.1} parent=1 // pred_region
      %40 = dma.done [#allocation6], 512
    $region21: #{tpu_custom_call.1} parent=1 // pred_fallthru
      _
    %v41 = vld [vmem:[#allocation2] sm:$0xff]
    %v42 = vld [vmem:[#allocation5] sm:$0xff]
    %v43 = vld [vmem:[#allocation5 + $0x8] sm:$0xff]
    %v44 = vld [vmem:[#allocation5 + $0x10] sm:$0xff]
    %v45 = vld [vmem:[#allocation5 + $0x18] sm:$0xff]
    %v46 = vld [vmem:[%s2] sm:$0x1]
    %v48 = vlaneseq
    %v49 = vshrl.u32 %v48, 7
    %v50 = vsub.s32 0, %v49
    %v51 = vrot.slane %v46, %v50
    %vm53 = vcmask 261120
    %v55 = vsel %vm53, %v41, 0
    %57 = vmatprep.subr.mxu0 0.0
    %58 = vmatpush1.msra.mxu0 0.0
    %59 = vmatprep.subr.mxu0 0.0
    %60 = vmatpush1.msra.mxu0 0.0
    %61 = vmatprep.subr.mxu0 0.0
    %62 = vmatpush1.msra.mxu0 0.0
    %63 = vmatprep.subr.mxu0 0.0
    %64 = vmatpush1.msra.mxu0 0.0
    %65 = vmatprep.subr.mxu0 0.0
    %66 = vmatpush1.msra.mxu0 0.0
    %67 = vmatprep.subr.mxu0 0.0
    %68 = vmatpush1.msra.mxu0 0.0
    %69 = vmatprep.subr.mxu0 0.0
    %70 = vmatpush1.msra.mxu0 0.0
    %71 = vmatprep.subr.mxu0 0.0
    %72 = vmatpush1.msra.mxu0 0.0
    %73 = vmatprep.subr.mxu0 0.0
    %74 = vmatpush1.msra.mxu0 0.0
    %75 = vmatprep.subr.mxu0 0.0
    %76 = vmatpush1.msra.mxu0 0.0
    %77 = vmatprep.subr.mxu0 0.0
    %78 = vmatpush1.msra.mxu0 0.0
    %79 = vmatprep.subr.mxu0 0.0
    %80 = vmatpush1.msra.mxu0 0.0
    %81 = vmatprep.subr.mxu0 0.0
    %82 = vmatpush1.msra.mxu0 %v45
    %83 = vmatprep.subr.mxu0 0.0
    %84 = vmatpush1.msra.mxu0 %v44
    %85 = vmatprep.subr.mxu0 0.0
    %86 = vmatpush1.msra.mxu0 %v43
    %87 = vmatprep.subr.mxu0 0.0
    %88 = vmatpush1.msra.mxu0 %v42
    %89 = vmatprep.subr.mxu0 0.0
    %90 = vmatpush2.msra.mxu0 0.0
    %91 = vmatprep.subr.mxu0 0.0
    %92 = vmatpush2.msra.mxu0 0.0
    %93 = vmatprep.subr.mxu0 0.0
    %94 = vmatpush2.msra.mxu0 0.0
    %95 = vmatprep.subr.mxu0 0.0
    %96 = vmatpush2.msra.mxu0 0.0
    %97 = vmatprep.subr.mxu0 0.0
    %98 = vmatpush2.msra.mxu0 0.0
    %99 = vmatprep.subr.mxu0 0.0
    %100 = vmatpush2.msra.mxu0 0.0
    %101 = vmatprep.subr.mxu0 0.0
    %102 = vmatpush2.msra.mxu0 0.0
    %103 = vmatprep.subr.mxu0 0.0
    %104 = vmatpush2.msra.mxu0 0.0
    %105 = vmatprep.subr.mxu0 0.0
    %106 = vmatpush2.msra.mxu0 0.0
    %107 = vmatprep.subr.mxu0 0.0
    %108 = vmatpush2.msra.mxu0 0.0
    %109 = vmatprep.subr.mxu0 0.0
    %110 = vmatpush2.msra.mxu0 0.0
    %111 = vmatprep.subr.mxu0 0.0
    %112 = vmatpush2.msra.mxu0 0.0
    %113 = vmatprep.subr.mxu0 0.0
    %114 = vmatpush2.msra.mxu0 0.0
    %115 = vmatprep.subr.mxu0 0.0
    %116 = vmatpush2.msra.mxu0 0.0
    %117 = vmatprep.subr.mxu0 0.0
    %118 = vmatpush2.msra.mxu0 0.0
    %119 = vmatprep.subr.mxu0 0.0
    %120 = vmatpush2.msra.mxu0 0.0
    %121 = vmatprep.mubr.f32.mxu0 0.0
    %122 = vmatmul.mubr.f32.gmra.mxu0 %v55
    %v123 = vpop.f32.mrf.mxu0
    %v124 = vadd.f32 %v51, %v123
    %v125 = vpop.f32.mrf.mxu0
    %126 = vdwg.mxu0
    %vm127 = vcmask 523264
    %128 = vst.msk [vmem:[#allocation7] sm:$0xff] %vm127, %v124
    // Predicated region
    $region22: #{tpu_custom_call.1} parent=1 // pred_check
      _
    $region23: #{tpu_custom_call.1} parent=1 // pred_check_branch
      %130 = sbr.rel (0) target = $region25
    $region24: #{tpu_custom_call.1} parent=1 // pred_region
      %s132 = ssub.s32 128, 128
      %133 = vsyncadd [#allocation4], %s132
      %s135 = sshll.u32 [#allocation7], 4
      %s136 = int_to_ptr.vmem [resolvable:$true] %s135
      %138 = dma.vmem_to_hbm [thread:$0]  %s136, 128, %s3, [#allocation4]
    $region25: #{tpu_custom_call.1} parent=1 // pred_fallthru
      _
    // Predicated region
    $region26: #{tpu_custom_call.1} parent=1 // pred_check
      _
    $region27: #{tpu_custom_call.1} parent=1 // pred_check_branch
      %140 = sbr.rel (0) target = $region29
    $region28: #{tpu_custom_call.1} parent=1 // pred_region
      %141 = dma.done [#allocation4], 128
    $region29: #{tpu_custom_call.1} parent=1 // pred_fallthru
      _
    %142 = vsyncpa [#allocation3], 1
    %143 = vsyncpa [#allocation6], 1
    %144 = vsyncpa [#allocation4], 1

// kernel: tpu_custom_call.1
$region0: #{tpu_custom_call.1}
  #allocation0 [shape = 'u32[]', space=smem, size = 0x4, offset = 0x4, fixed_abs, tag = 'smem constant byte address 0x4 - core index']
  #allocation1 [shape = 'u32[144,128]{1,0:T(1,128)}', space=vmem, size = 0x12000, scoped, tag = 'internal scratch']
  %s0 = inlined_call_operand.hbm [shape: f32[8,32], index: 0, kind: input, shape index: {}]
  %s1 = inlined_call_operand.hbm [shape: f32[32,64], index: 1, kind: input, shape index: {}]
  %s2 = inlined_call_operand.vmem [shape: f32[1,64], index: 2, kind: input, shape index: {}]
  %s3 = inlined_call_operand.hbm [shape: f32[8,64], index: 3, kind: output, shape index: {}]
  %s4 = sld [smem:[#allocation0]]
  $region30: #{tpu_custom_call.1} parent=0
    _
  %s6 = ssub.s32 1, %s4
  %s7 = scalar_select 0, %s6, %s4
  $region1: #{tpu_custom_call.1} parent=0
    #allocation2 [shape = 'u8[4096]{0}', space=vmem, size = 0x1000, scoped, tag = 'input window, operand 0, single buffered']
    #allocation3 [shape = 's32[1]{0}', space=sflag, size = 0x4, scoped, tag = 'scoped memory for tpu_custom_call.1']
    #allocation4 [shape = 's32[1]{0}', space=sflag, size = 0x4, scoped, tag = 'scoped memory for tpu_custom_call.1']
    #allocation5 [shape = 'u8[16384]{0}', space=vmem, size = 0x4000, scoped, tag = 'input window, operand 1, single buffered']
    #allocation6 [shape = 's32[1]{0}', space=sflag, size = 0x4, scoped, tag = 'scoped memory for tpu_custom_call.1']
    #allocation7 [shape = 'u8[4096]{0}', space=vmem, size = 0x1000, scoped, tag = 'output window, operand 0, single buffered']
    %8 = vsyncpa [#allocation3], 0
    %9 = vsyncpa [#allocation6], 0
    %10 = vsyncpa [#allocation4], 0
    // Predicated region
    $region2: #{tpu_custom_call.1} parent=1 // pred_check
      _
    $region3: #{tpu_custom_call.1} parent=1 // pred_check_branch
      %12 = sbr.rel (0) target = $region5
    $region4: #{tpu_custom_call.1} parent=1 // pred_region
      %s14 = ssub.s32 128, 128
      %15 = vsyncadd [#allocation3], %s14
      %s17 = sshll.u32 [#allocation2], 4
      %s18 = int_to_ptr.vmem [resolvable:$true] %s17
      %20 = dma.hbm_to_vmem [thread:$0]  %s0, 128, %s18, [#allocation3]
    $region5: #{tpu_custom_call.1} parent=1 // pred_fallthru
      _
    // Predicated region
    $region6: #{tpu_custom_call.1} parent=1 // pred_check
      _
    $region7: #{tpu_custom_call.1} parent=1 // pred_check_branch
      %22 = sbr.rel (0) target = $region9
    $region8: #{tpu_custom_call.1} parent=1 // pred_region
      %s24 = ssub.s32 512, 512
      %25 = vsyncadd [#allocation6], %s24
      %s26 = sshll.u32 [#allocation5], 4
      %s27 = int_to_ptr.vmem [resolvable:$true] %s26
      %32 = dma.hbm_to_vmem [thread:$0]  %s1, 512, %s27, [#allocation6], 128, 128, 8
    $region9: #{tpu_custom_call.1} parent=1 // pred_fallthru
      _
    // Predicated region
    $region10: #{tpu_custom_call.1} parent=1 // pred_check
      _
    $region11: #{tpu_custom_call.1} parent=1 // pred_check_branch
      %34 = sbr.rel (0) target = $region13
    $region12: #{tpu_custom_call.1} parent=1 // pred_region
      _
    $region13: #{tpu_custom_call.1} parent=1 // pred_fallthru
      _
    // Predicated region
    $region14: #{tpu_custom_call.1} parent=1 // pred_check
      _
    $region15: #{tpu_custom_call.1} parent=1 // pred_check_branch
      %36 = sbr.rel (0) target = $region17
    $region16: #{tpu_custom_call.1} parent=1 // pred_region
      %37 = dma.done [#allocation3], 128
    $region17: #{tpu_custom_call.1} parent=1 // pred_fallthru
      _
    // Predicated region
    $region18: #{tpu_custom_call.1} parent=1 // pred_check
      _
    $region19: #{tpu_custom_call.1} parent=1 // pred_check_branch
      %39 = sbr.rel (0) target = $region21
    $region20: #{tpu_custom_call.1} parent=1 // pred_region
      %40 = dma.done [#allocation6], 512
    $region21: #{tpu_custom_call.1} parent=1 // pred_fallthru
      _
    %v41 = vld [vmem:[#allocation2] sm:$0xff]
    %v42 = vld [vmem:[#allocation5] sm:$0xff]
    %v43 = vld [vmem:[#allocation5 + $0x8] sm:$0xff]
    %v44 = vld [vmem:[#allocation5 + $0x10] sm:$0xff]
    %v45 = vld [vmem:[#allocation5 + $0x18] sm:$0xff]
    %v46 = vld [vmem:[%s2] sm:$0x1]
    %v48 = vlaneseq
    %v49 = vshrl.u32 %v48, 7
    %v50 = vsub.s32 0, %v49
    %v51 = vrot.slane %v46, %v50
    %vm53 = vcmask 261120
    %v55 = vsel %vm53, %v41, 0
    %57 = vmatprep.subr.mxu0 0.0
    %58 = vmatpush1.msra.mxu0 0.0
    %59 = vmatprep.subr.mxu0 0.0
    %60 = vmatpush1.msra.mxu0 0.0
    %61 = vmatprep.subr.mxu0 0.0
    %62 = vmatpush1.msra.mxu0 0.0
    %63 = vmatprep.subr.mxu0 0.0
    %64 = vmatpush1.msra.mxu0 0.0
    %65 = vmatprep.subr.mxu0 0.0
    %66 = vmatpush1.msra.mxu0 0.0
    %67 = vmatprep.subr.mxu0 0.0
    %68 = vmatpush1.msra.mxu0 0.0
    %69 = vmatprep.subr.mxu0 0.0
    %70 = vmatpush1.msra.mxu0 0.0
    %71 = vmatprep.subr.mxu0 0.0
    %72 = vmatpush1.msra.mxu0 0.0
    %73 = vmatprep.subr.mxu0 0.0
    %74 = vmatpush1.msra.mxu0 0.0
    %75 = vmatprep.subr.mxu0 0.0
    %76 = vmatpush1.msra.mxu0 0.0
    %77 = vmatprep.subr.mxu0 0.0
    %78 = vmatpush1.msra.mxu0 0.0
    %79 = vmatprep.subr.mxu0 0.0
    %80 = vmatpush1.msra.mxu0 0.0
    %81 = vmatprep.subr.mxu0 0.0
    %82 = vmatpush1.msra.mxu0 %v45
    %83 = vmatprep.subr.mxu0 0.0
    %84 = vmatpush1.msra.mxu0 %v44
    %85 = vmatprep.subr.mxu0 0.0
    %86 = vmatpush1.msra.mxu0 %v43
    %87 = vmatprep.subr.mxu0 0.0
    %88 = vmatpush1.msra.mxu0 %v42
    %89 = vmatprep.subr.mxu0 0.0
    %90 = vmatpush2.msra.mxu0 0.0
    %91 = vmatprep.subr.mxu0 0.0
    %92 = vmatpush2.msra.mxu0 0.0
    %93 = vmatprep.subr.mxu0 0.0
    %94 = vmatpush2.msra.mxu0 0.0
    %95 = vmatprep.subr.mxu0 0.0
    %96 = vmatpush2.msra.mxu0 0.0
    %97 = vmatprep.subr.mxu0 0.0
    %98 = vmatpush2.msra.mxu0 0.0
    %99 = vmatprep.subr.mxu0 0.0
    %100 = vmatpush2.msra.mxu0 0.0
    %101 = vmatprep.subr.mxu0 0.0
    %102 = vmatpush2.msra.mxu0 0.0
    %103 = vmatprep.subr.mxu0 0.0
    %104 = vmatpush2.msra.mxu0 0.0
    %105 = vmatprep.subr.mxu0 0.0
    %106 = vmatpush2.msra.mxu0 0.0
    %107 = vmatprep.subr.mxu0 0.0
    %108 = vmatpush2.msra.mxu0 0.0
    %109 = vmatprep.subr.mxu0 0.0
    %110 = vmatpush2.msra.mxu0 0.0
    %111 = vmatprep.subr.mxu0 0.0
    %112 = vmatpush2.msra.mxu0 0.0
    %113 = vmatprep.subr.mxu0 0.0
    %114 = vmatpush2.msra.mxu0 0.0
    %115 = vmatprep.subr.mxu0 0.0
    %116 = vmatpush2.msra.mxu0 0.0
    %117 = vmatprep.subr.mxu0 0.0
    %118 = vmatpush2.msra.mxu0 0.0
    %119 = vmatprep.subr.mxu0 0.0
    %120 = vmatpush2.msra.mxu0 0.0
    %121 = vmatprep.mubr.f32.mxu0 0.0
    %122 = vmatmul.mubr.f32.gmra.mxu0 %v55
    %v123 = vpop.f32.mrf.mxu0
    %v124 = vadd.f32 %v51, %v123
    %v125 = vpop.f32.mrf.mxu0
    %126 = vdwg.mxu0
    %vm127 = vcmask 523264
    %128 = vst.msk [vmem:[#allocation7] sm:$0xff] %vm127, %v124
    // Predicated region
    $region22: #{tpu_custom_call.1} parent=1 // pred_check
      _
    $region23: #{tpu_custom_call.1} parent=1 // pred_check_branch
      %130 = sbr.rel (0) target = $region25
    $region24: #{tpu_custom_call.1} parent=1 // pred_region
      %s132 = ssub.s32 128, 128
      %133 = vsyncadd [#allocation4], %s132
      %s135 = sshll.u32 [#allocation7], 4
      %s136 = int_to_ptr.vmem [resolvable:$true] %s135
      %138 = dma.vmem_to_hbm [thread:$0]  %s136, 128, %s3, [#allocation4]
    $region25: #{tpu_custom_call.1} parent=1 // pred_fallthru
      _
    // Predicated region
    $region26: #{tpu_custom_call.1} parent=1 // pred_check
      _
    $region27: #{tpu_custom_call.1} parent=1 // pred_check_branch
      %140 = sbr.rel (0) target = $region29
    $region28: #{tpu_custom_call.1} parent=1 // pred_region
      %141 = dma.done [#allocation4], 128
    $region29: #{tpu_custom_call.1} parent=1 // pred_fallthru
      _
    %142 = vsyncpa [#allocation3], 1
    %143 = vsyncpa [#allocation6], 1
    %144 = vsyncpa [#allocation4], 1

</llo_original>
